<compile_context>
chip_gen: v7x
topology: tpu7x:2x2x1
jax: 0.10.0
libtpu: 0.0.40
codegen_flags: <defaults>
</compile_context>

<pallas_src>
import functools

import jax
import jax.numpy as jnp
from jax.experimental import pallas as pl
from jax.experimental.pallas import tpu as pltpu

IGNORE_INDEX = -100

_NUM_CORE_SPLIT = 2                         # leading "parallel" grid axis (v7x: 2 TCs)
_VMEM_INPUT_BUDGET = 40 * 1024 * 1024       # double-buffered logits+teacher blocks
_VMEM_LIMIT_BYTES = 50 * 1024 * 1024        # scoped VMEM limit (< 64 MiB v7x physical)


def _kd_loss_kernel(logits_ref, teacher_ref, label_ref,
                    num_out_ref, den_out_ref,
                    num_acc, den_acc,
                    *, n_rows, row_tile, blocks_per_core):
    c = pl.program_id(0)          # core-split index ("parallel")
    j = pl.program_id(1)          # row-block index within this core ("arbitrary")

    @pl.when(j == 0)
    def _():
        num_acc[...] = jnp.zeros_like(num_acc)
        den_acc[...] = jnp.zeros_like(den_acc)

    logits = logits_ref[...].astype(jnp.float32)        # (TR, V)
    teacher = teacher_ref[...].astype(jnp.float32)      # (TR, V)

    # Teacher softmax numerator / denominator; the 1/Z_t divide is deferred
    # to a single per-row divide after the masked sum.
    t_max = jnp.max(teacher, axis=-1, keepdims=True)
    t_exp = jnp.exp(teacher - t_max)
    t_sum = jnp.sum(t_exp, axis=-1, keepdims=True)      # (TR, 1)

    # Student log-softmax (float32).
    l_max = jnp.max(logits, axis=-1, keepdims=True)
    shifted = logits - l_max
    lse = jnp.log(jnp.sum(jnp.exp(shifted), axis=-1, keepdims=True))
    logprobs = shifted - lse

    # masked_fill(teacher_probs * logprobs, isinf(logits), 0), summed over V.
    inf_mask = jnp.isinf(logits)
    s = jnp.sum(jnp.where(inf_mask, jnp.float32(0.0), t_exp * logprobs),
                axis=-1, keepdims=True)                 # (TR, 1)
    x = s / t_sum                                       # one divide per row

    # Row validity: real (non-padded / non-duplicated-tail) row AND label != IGNORE_INDEX.
    blk = c * blocks_per_core + j                       # un-clamped logical block index
    row_ids = blk * row_tile + jax.lax.broadcasted_iota(jnp.int32, (row_tile, 1), 0)
    valid = (row_ids < n_rows) & (label_ref[...] != IGNORE_INDEX)

    # Vector-shaped accumulation (pure VPU add); scalar reduce only at the end.
    num_acc[...] += jnp.where(valid, x, jnp.float32(0.0))
    den_acc[...] += valid.astype(jnp.float32)

    @pl.when(j == pl.num_programs(1) - 1)
    def _():
        num_out_ref[...] = jnp.sum(num_acc[...], keepdims=True).reshape(1, 1, 1)
        den_out_ref[...] = jnp.sum(den_acc[...], keepdims=True).reshape(1, 1, 1)


def _pick_row_tile(n_rows, vocab, itemsize):
    """Largest multiple-of-8 row tile whose double-buffered input blocks fit the budget."""
    max_rows = max(8, _VMEM_INPUT_BUDGET // (4 * vocab * itemsize))  # 2 inputs x 2 buffers
    tr = min(max_rows, 512)
    tr = max(8, (tr // 8) * 8)
    n_pad = ((n_rows + 7) // 8) * 8
    return min(tr, max(n_pad, 8))


def kd_loss(logits, teacher_logits, label, *, row_tile=None):
    """logits, teacher_logits: (B, T, V) f32/bf16; label: (B, T) int. Returns scalar f32."""
    B, T, V = logits.shape
    N = B * T

    logits2d = logits.reshape(N, V)
    teacher2d = teacher_logits.reshape(N, V)
    # (N, 1) label block is lane-width 1; bytes are negligible so this stays simple.
    label2d = label.reshape(N, 1).astype(jnp.int32)

    itemsize = max(jnp.dtype(logits.dtype).itemsize,
                   jnp.dtype(teacher_logits.dtype).itemsize)
    if row_tile is None:
        row_tile = _pick_row_tile(N, V, itemsize)
    assert row_tile % 8 == 0, "row_tile must be a multiple of 8 (sublane)"

    num_blocks = pl.cdiv(N, row_tile)
    blocks_per_core = pl.cdiv(num_blocks, _NUM_CORE_SPLIT)

    def row_block_map(c, j):
        blk = c * blocks_per_core + j
        # Clamp fully-out-of-range tail blocks onto the last valid block; the
        # kernel masks those rows via the un-clamped index, so data is unused.
        return (jnp.minimum(blk, num_blocks - 1), 0)

    needed_inputs = 2 * row_tile * V * (jnp.dtype(logits.dtype).itemsize
                                        + jnp.dtype(teacher_logits.dtype).itemsize)
    vmem_limit = max(_VMEM_LIMIT_BYTES, int(needed_inputs) + 8 * 1024 * 1024)

    kernel = functools.partial(_kd_loss_kernel, n_rows=N, row_tile=row_tile,
                               blocks_per_core=blocks_per_core)

    num_out, den_out = pl.pallas_call(
        kernel,
        out_shape=(jax.ShapeDtypeStruct((_NUM_CORE_SPLIT, 1, 1), jnp.float32),
                   jax.ShapeDtypeStruct((_NUM_CORE_SPLIT, 1, 1), jnp.float32)),
        grid_spec=pltpu.PrefetchScalarGridSpec(
            num_scalar_prefetch=0,
            grid=(_NUM_CORE_SPLIT, blocks_per_core),
            in_specs=[
                pl.BlockSpec((row_tile, V), row_block_map),
                pl.BlockSpec((row_tile, V), row_block_map),
                pl.BlockSpec((row_tile, 1), row_block_map),
            ],
            out_specs=[
                pl.BlockSpec((1, 1, 1), lambda c, j: (c, 0, 0)),
                pl.BlockSpec((1, 1, 1), lambda c, j: (c, 0, 0)),
            ],
            scratch_shapes=[
                pltpu.VMEM((row_tile, 1), jnp.float32),   # per-row numerator partials
                pltpu.VMEM((row_tile, 1), jnp.float32),   # per-row denominator partials
            ],
        ),
        compiler_params=pltpu.CompilerParams(
            dimension_semantics=("parallel", "arbitrary"),
            vmem_limit_bytes=vmem_limit,
        ),
    )(logits2d, teacher2d, label2d)

    return -(jnp.sum(num_out) / jnp.sum(den_out))


def kd_loss_ref(logits, teacher_logits, label):
    """Pure-JAX reference matching the PyTorch forward."""
    teacher_probs = jax.nn.softmax(teacher_logits.astype(jnp.float32), axis=-1)
    logprobs = jax.nn.log_softmax(logits.astype(jnp.float32), axis=-1)
    inf_mask = jnp.isinf(logits)
    prod = jnp.where(inf_mask, 0.0, teacher_probs * logprobs)
    x = jnp.sum(prod, axis=-1).reshape(-1)
    mask = (label != IGNORE_INDEX).astype(jnp.float32).reshape(-1)
    return -jnp.sum(x * mask) / jnp.sum(mask)


if __name__ == "__main__":
    key = jax.random.PRNGKey(0)
    k1, k2, k3 = jax.random.split(key, 3)

    # Test 1: float32 inputs, auto row_tile.
    B, T, V = 2, 8, 512
    logits = jax.random.normal(k1, (B, T, V), dtype=jnp.float32)
    teacher_logits = jax.random.normal(k2, (B, T, V), dtype=jnp.float32)
    label = jax.random.randint(k3, (B, T), 0, V, dtype=jnp.int32)
    label = label.at[0, 0].set(IGNORE_INDEX)
    label = label.at[1, 3].set(IGNORE_INDEX)

    loss = kd_loss(logits, teacher_logits, label)
    jax.block_until_ready(loss)
    ref = kd_loss_ref(logits, teacher_logits, label)
    assert jnp.allclose(loss, ref, rtol=1e-5, atol=1e-5), (loss, ref)

    # Test 2: bf16 inputs (halves HBM traffic), compute stays f32 in-kernel.
    logits_bf = logits.astype(jnp.bfloat16)
    teacher_bf = teacher_logits.astype(jnp.bfloat16)
    loss_bf = kd_loss(logits_bf, teacher_bf, label)
    jax.block_until_ready(loss_bf)
    ref_bf = kd_loss_ref(logits_bf, teacher_bf, label)
    assert jnp.allclose(loss_bf, ref_bf, rtol=1e-5, atol=1e-5), (loss_bf, ref_bf)

    # Test 3: ragged row count (N = 15 not divisible by row_tile) exercising
    # the tail mask and the clamped two-core block split.
    B2, T2, V2 = 3, 5, 256
    kk1, kk2, kk3 = jax.random.split(jax.random.PRNGKey(1), 3)
    logits2 = jax.random.normal(kk1, (B2, T2, V2), dtype=jnp.float32)
    teacher2 = jax.random.normal(kk2, (B2, T2, V2), dtype=jnp.float32)
    label2 = jax.random.randint(kk3, (B2, T2), 0, V2, dtype=jnp.int32)
    label2 = label2.at[0, 1].set(IGNORE_INDEX)
    loss2 = kd_loss(logits2, teacher2, label2, row_tile=8)
    jax.block_until_ready(loss2)
    ref2 = kd_loss_ref(logits2, teacher2, label2)
    assert jnp.allclose(loss2, ref2, rtol=1e-5, atol=1e-5), (loss2, ref2)

    print("KERNEL_OK")
</pallas_src>

<mosaic_0001>
module attributes {stable_mosaic.version = 11 : i64} {
  func.func @_kd_loss_kernel(%arg0: i32, %arg1: i32, %arg2: memref<16x512xf32, #tpu.memory_space<vmem>>, %arg3: memref<16x512xf32, #tpu.memory_space<vmem>>, %arg4: memref<16x1xi32, #tpu.memory_space<vmem>>, %arg5: memref<1x1x1xf32, #tpu.memory_space<vmem>>, %arg6: memref<1x1x1xf32, #tpu.memory_space<vmem>>, %arg7: memref<16x1xf32, #tpu.memory_space<vmem>>, %arg8: memref<16x1xf32, #tpu.memory_space<vmem>>) attributes {dimension_semantics = [#tpu.dimension_semantics<parallel>, #tpu.dimension_semantics<arbitrary>], iteration_bounds = array<i64: 2, 1>, scalar_prefetch = 0 : i64, scratch_operands = 2 : i64, tpu.core_type = #tpu.core_type<tc>, window_params = [{transform_indices = @transform_0, window_bounds = array<i64: 16, 512>}, {transform_indices = @transform_1, window_bounds = array<i64: 16, 512>}, {transform_indices = @transform_2, window_bounds = array<i64: 16, 1>}, {transform_indices = @transform_3, window_bounds = array<i64: 1, 1, 1>}, {transform_indices = @transform_4, window_bounds = array<i64: 1, 1, 1>}]} {
    %c0_i32 = arith.constant 0 : i32
    %0 = arith.cmpi eq, %arg1, %c0_i32 : i32
    %1 = arith.extui %0 : i1 to i32
    %c0_i32_0 = arith.constant 0 : i32
    %2 = arith.cmpi ne, %1, %c0_i32_0 : i32
    scf.if %2 {
      %cst_24 = arith.constant 0.000000e+00 : f32
      %56 = vector.broadcast %cst_24 : f32 to vector<16x1xf32>
      %c0_25 = arith.constant 0 : index
      %c0_26 = arith.constant 0 : index
      %57 = vector.load %arg7[%c0_25, %c0_26] : memref<16x1xf32, #tpu.memory_space<vmem>>, vector<16x1xf32>
      tpu.vector_store %arg7[%c0_25, %c0_26], %56 {strides = array<i32>} : memref<16x1xf32, #tpu.memory_space<vmem>>, vector<16x1xf32>,
      %cst_27 = arith.constant 0.000000e+00 : f32
      %58 = vector.broadcast %cst_27 : f32 to vector<16x1xf32>
      %c0_28 = arith.constant 0 : index
      %c0_29 = arith.constant 0 : index
      %59 = vector.load %arg8[%c0_28, %c0_29] : memref<16x1xf32, #tpu.memory_space<vmem>>, vector<16x1xf32>
      tpu.vector_store %arg8[%c0_28, %c0_29], %58 {strides = array<i32>} : memref<16x1xf32, #tpu.memory_space<vmem>>, vector<16x1xf32>,
    } else {
    }
    %c0 = arith.constant 0 : index
    %c0_1 = arith.constant 0 : index
    %3 = vector.load %arg2[%c0, %c0_1] : memref<16x512xf32, #tpu.memory_space<vmem>>, vector<16x512xf32>
    %c0_2 = arith.constant 0 : index
    %c0_3 = arith.constant 0 : index
    %4 = vector.load %arg3[%c0_2, %c0_3] : memref<16x512xf32, #tpu.memory_space<vmem>>, vector<16x512xf32>
    %cst = arith.constant dense<0xFF800000> : vector<16xf32>
    %5 = vector.multi_reduction <maximumf>, %4, %cst [1] : vector<16x512xf32> to vector<16xf32>
    %6 = vector.shape_cast %5 : vector<16xf32> to vector<16x1xf32>
    %7 = vector.broadcast %6 : vector<16x1xf32> to vector<16x512xf32>
    %8 = arith.subf %4, %7 : vector<16x512xf32>
    %9 = math.exp %8 : vector<16x512xf32>
    %cst_4 = arith.constant dense<0.000000e+00> : vector<16xf32>
    %10 = vector.multi_reduction <add>, %9, %cst_4 [1] : vector<16x512xf32> to vector<16xf32>
    %11 = vector.shape_cast %10 : vector<16xf32> to vector<16x1xf32>
    %cst_5 = arith.constant dense<0xFF800000> : vector<16xf32>
    %12 = vector.multi_reduction <maximumf>, %3, %cst_5 [1] : vector<16x512xf32> to vector<16xf32>
    %13 = vector.shape_cast %12 : vector<16xf32> to vector<16x1xf32>
    %14 = vector.broadcast %13 : vector<16x1xf32> to vector<16x512xf32>
    %15 = arith.subf %3, %14 : vector<16x512xf32>
    %16 = math.exp %15 : vector<16x512xf32>
    %cst_6 = arith.constant dense<0.000000e+00> : vector<16xf32>
    %17 = vector.multi_reduction <add>, %16, %cst_6 [1] : vector<16x512xf32> to vector<16xf32>
    %18 = vector.shape_cast %17 : vector<16xf32> to vector<16x1xf32>
    %19 = math.log %18 : vector<16x1xf32>
    %20 = vector.broadcast %19 : vector<16x1xf32> to vector<16x512xf32>
    %21 = arith.subf %15, %20 : vector<16x512xf32>
    %22 = math.absf %3 : vector<16x512xf32>
    %cst_7 = arith.constant 0x7F800000 : f32
    %23 = vector.broadcast %cst_7 : f32 to vector<16x512xf32>
    %24 = arith.cmpf oeq, %22, %23 : vector<16x512xf32>
    %25 = arith.mulf %9, %21 : vector<16x512xf32>
    %cst_8 = arith.constant 0.000000e+00 : f32
    %26 = vector.broadcast %cst_8 : f32 to vector<16x512xf32>
    %27 = arith.select %24, %26, %25 : vector<16x512xi1>, vector<16x512xf32>
    %cst_9 = arith.constant dense<0.000000e+00> : vector<16xf32>
    %28 = vector.multi_reduction <add>, %27, %cst_9 [1] : vector<16x512xf32> to vector<16xf32>
    %29 = vector.shape_cast %28 : vector<16xf32> to vector<16x1xf32>
    %30 = arith.divf %29, %11 : vector<16x1xf32>
    %c1_i32 = arith.constant 1 : i32
    %31 = arith.muli %arg0, %c1_i32 : i32
    %32 = arith.addi %31, %arg1 : i32
    %c16_i32 = arith.constant 16 : i32
    %33 = arith.muli %32, %c16_i32 : i32
    %34 = tpu.iota {dimensions = array<i32: 0>} : vector<16x1xi32>
    %35 = vector.broadcast %33 : i32 to vector<16x1xi32>
    %36 = arith.addi %35, %34 : vector<16x1xi32>
    %c16_i32_10 = arith.constant 16 : i32
    %37 = vector.broadcast %c16_i32_10 : i32 to vector<16x1xi32>
    %38 = arith.cmpi slt, %36, %37 : vector<16x1xi32>
    %c0_11 = arith.constant 0 : index
    %c0_12 = arith.constant 0 : index
    %39 = vector.load %arg4[%c0_11, %c0_12] : memref<16x1xi32, #tpu.memory_space<vmem>>, vector<16x1xi32>
    %c-100_i32 = arith.constant -100 : i32
    %40 = vector.broadcast %c-100_i32 : i32 to vector<16x1xi32>
    %41 = arith.cmpi ne, %39, %40 : vector<16x1xi32>
    %42 = arith.andi %38, %41 : vector<16x1xi1>
    %c0_13 = arith.constant 0 : index
    %c0_14 = arith.constant 0 : index
    %43 = vector.load %arg7[%c0_13, %c0_14] : memref<16x1xf32, #tpu.memory_space<vmem>>, vector<16x1xf32>
    %cst_15 = arith.constant 0.000000e+00 : f32
    %44 = vector.broadcast %cst_15 : f32 to vector<16x1xf32>
    %45 = arith.select %42, %30, %44 : vector<16x1xi1>, vector<16x1xf32>
    %46 = arith.addf %43, %45 : vector<16x1xf32>
    %c0_16 = arith.constant 0 : index
    %c0_17 = arith.constant 0 : index
    %47 = vector.load %arg7[%c0_16, %c0_17] : memref<16x1xf32, #tpu.memory_space<vmem>>, vector<16x1xf32>
    tpu.vector_store %arg7[%c0_16, %c0_17], %46 {strides = array<i32>} : memref<16x1xf32, #tpu.memory_space<vmem>>, vector<16x1xf32>,
    %c0_18 = arith.constant 0 : index
    %c0_19 = arith.constant 0 : index
    %48 = vector.load %arg8[%c0_18, %c0_19] : memref<16x1xf32, #tpu.memory_space<vmem>>, vector<16x1xf32>
    %49 = arith.extui %42 : vector<16x1xi1> to vector<16x1xi32>
    %50 = arith.sitofp %49 : vector<16x1xi32> to vector<16x1xf32>
    %51 = arith.addf %48, %50 : vector<16x1xf32>
    %c0_20 = arith.constant 0 : index
    %c0_21 = arith.constant 0 : index
    %52 = vector.load %arg8[%c0_20, %c0_21] : memref<16x1xf32, #tpu.memory_space<vmem>>, vector<16x1xf32>
    tpu.vector_store %arg8[%c0_20, %c0_21], %51 {strides = array<i32>} : memref<16x1xf32, #tpu.memory_space<vmem>>, vector<16x1xf32>,
    %c0_i32_22 = arith.constant 0 : i32
    %53 = arith.cmpi eq, %arg1, %c0_i32_22 : i32
    %54 = arith.extui %53 : i1 to i32
    %c0_i32_23 = arith.constant 0 : i32
    %55 = arith.cmpi ne, %54, %c0_i32_23 : i32
    scf.if %55 {
      %c0_24 = arith.constant 0 : index
      %c0_25 = arith.constant 0 : index
      %56 = vector.load %arg7[%c0_24, %c0_25] : memref<16x1xf32, #tpu.memory_space<vmem>>, vector<16x1xf32>
      %57 = vector.shape_cast %56 : vector<16x1xf32> to vector<1x16x1xf32>
      %cst_26 = arith.constant dense<0.000000e+00> : vector<1xf32>
      %58 = vector.multi_reduction <add>, %57, %cst_26 [1, 2] : vector<1x16x1xf32> to vector<1xf32>
      %59 = vector.shape_cast %58 : vector<1xf32> to vector<1x1x1xf32>
      %60 = vector.extract %59[0, 0, 0] : f32 from vector<1x1x1xf32>
      %61 = vector.broadcast %60 : f32 to vector<1x1xf32>
      %62 = vector.shape_cast %61 : vector<1x1xf32> to vector<1x1x1xf32>
      %c0_27 = arith.constant 0 : index
      %c0_28 = arith.constant 0 : index
      %c0_29 = arith.constant 0 : index
      %63 = vector.load %arg5[%c0_27, %c0_28, %c0_29] : memref<1x1x1xf32, #tpu.memory_space<vmem>>, vector<1x1x1xf32>
      tpu.vector_store %arg5[%c0_27, %c0_28, %c0_29], %62 {strides = array<i32>} : memref<1x1x1xf32, #tpu.memory_space<vmem>>, vector<1x1x1xf32>,
      %c0_30 = arith.constant 0 : index
      %c0_31 = arith.constant 0 : index
      %64 = vector.load %arg8[%c0_30, %c0_31] : memref<16x1xf32, #tpu.memory_space<vmem>>, vector<16x1xf32>
      %65 = vector.shape_cast %64 : vector<16x1xf32> to vector<1x16x1xf32>
      %cst_32 = arith.constant dense<0.000000e+00> : vector<1xf32>
      %66 = vector.multi_reduction <add>, %65, %cst_32 [1, 2] : vector<1x16x1xf32> to vector<1xf32>
      %67 = vector.shape_cast %66 : vector<1xf32> to vector<1x1x1xf32>
      %68 = vector.extract %67[0, 0, 0] : f32 from vector<1x1x1xf32>
      %69 = vector.broadcast %68 : f32 to vector<1x1xf32>
      %70 = vector.shape_cast %69 : vector<1x1xf32> to vector<1x1x1xf32>
      %c0_33 = arith.constant 0 : index
      %c0_34 = arith.constant 0 : index
      %c0_35 = arith.constant 0 : index
      %71 = vector.load %arg6[%c0_33, %c0_34, %c0_35] : memref<1x1x1xf32, #tpu.memory_space<vmem>>, vector<1x1x1xf32>
      tpu.vector_store %arg6[%c0_33, %c0_34, %c0_35], %70 {strides = array<i32>} : memref<1x1x1xf32, #tpu.memory_space<vmem>>, vector<1x1x1xf32>,
    } else {
    }
    return
  }
  func.func @transform_0(%arg0: i32, %arg1: i32) -> (i32, i32) {
    %c1_i32 = arith.constant 1 : i32
    %0 = arith.muli %arg0, %c1_i32 : i32
    %1 = arith.addi %0, %arg1 : i32
    %c0_i32 = arith.constant 0 : i32
    %2 = arith.minsi %1, %c0_i32 : i32
    %c0_i32_0 = arith.constant 0 : i32
    %c0_i32_1 = arith.constant 0 : i32
    return %2, %c0_i32_0 : i32, i32
  }
  func.func @transform_1(%arg0: i32, %arg1: i32) -> (i32, i32) {
    %c1_i32 = arith.constant 1 : i32
    %0 = arith.muli %arg0, %c1_i32 : i32
    %1 = arith.addi %0, %arg1 : i32
    %c0_i32 = arith.constant 0 : i32
    %2 = arith.minsi %1, %c0_i32 : i32
    %c0_i32_0 = arith.constant 0 : i32
    %c0_i32_1 = arith.constant 0 : i32
    return %2, %c0_i32_0 : i32, i32
  }
  func.func @transform_2(%arg0: i32, %arg1: i32) -> (i32, i32) {
    %c1_i32 = arith.constant 1 : i32
    %0 = arith.muli %arg0, %c1_i32 : i32
    %1 = arith.addi %0, %arg1 : i32
    %c0_i32 = arith.constant 0 : i32
    %2 = arith.minsi %1, %c0_i32 : i32
    %c0_i32_0 = arith.constant 0 : i32
    %c0_i32_1 = arith.constant 0 : i32
    return %2, %c0_i32_0 : i32, i32
  }
  func.func @transform_3(%arg0: i32, %arg1: i32) -> (i32, i32, i32) {
    %c0_i32 = arith.constant 0 : i32
    %c0_i32_0 = arith.constant 0 : i32
    %c0_i32_1 = arith.constant 0 : i32
    return %arg0, %c0_i32, %c0_i32_0 : i32, i32, i32
  }
  func.func @transform_4(%arg0: i32, %arg1: i32) -> (i32, i32, i32) {
    %c0_i32 = arith.constant 0 : i32
    %c0_i32_0 = arith.constant 0 : i32
    %c0_i32_1 = arith.constant 0 : i32
    return %arg0, %c0_i32, %c0_i32_0 : i32, i32, i32
  }
}

</mosaic_0001>

<llo_original>
// kernel: tpu_custom_call.1
$region0: #{tpu_custom_call.1}
  #allocation0 [shape = 'u32[]', space=smem, size = 0x4, offset = 0x4, fixed_abs, tag = 'smem constant byte address 0x4 - core index']
  #allocation1 [shape = 'u32[144,128]{1,0:T(1,128)}', space=vmem, size = 0x12000, scoped, tag = 'internal scratch']
  #allocation2 [shape = 'f32[16,1]{1,0:T(8,128)}', space=vmem, size = 0x2000, scoped, tag = 'scratch operand']
  #allocation3 [shape = 'f32[16,1]{1,0:T(8,128)}', space=vmem, size = 0x2000, scoped, tag = 'scratch operand']
  %s0 = inlined_call_operand.hbm [shape: f32[16,512], index: 0, kind: input, shape index: {}]
  %s1 = inlined_call_operand.hbm [shape: f32[16,512], index: 1, kind: input, shape index: {}]
  %s2 = inlined_call_operand.vmem [shape: s32[16,1], index: 2, kind: input, shape index: {}]
  %s3 = inlined_call_operand.vmem [shape: f32[2,1,1], index: 3, kind: output, shape index: {0}]
  %s4 = inlined_call_operand.vmem [shape: f32[2,1,1], index: 4, kind: output, shape index: {1}]
  %5 = xla_tuple %s3, %s4
  %s6 = sld [smem:[#allocation0]]
  $region69: #{tpu_custom_call.1} parent=0
    _
  %s8 = ssub.s32 1, %s6
  %s9 = scalar_select 0, %s8, %s6
  $region1: #{tpu_custom_call.1} parent=0
    #allocation4 [shape = 'u8[65536]{0}', space=vmem, size = 0x10000, scoped, tag = 'input window, operand 0']
    #allocation5 [shape = 's32[2]{0}', space=sflag, size = 0x8, scoped, tag = 'scoped memory for tpu_custom_call.1']
    #allocation6 [shape = 'u8[65536]{0}', space=vmem, size = 0x10000, scoped, tag = 'input window, operand 1']
    #allocation7 [shape = 's32[2]{0}', space=sflag, size = 0x8, scoped, tag = 'scoped memory for tpu_custom_call.1']
    %10 = vsyncpa [#allocation5], 0
    %s11 = scalar_lea.sflag [#allocation5], 1
    %12 = vsyncpa %s11, 0
    %13 = vsyncpa [#allocation7], 0
    %s14 = scalar_lea.sflag [#allocation7], 1
    %15 = vsyncpa %s14, 0
    loop: start=0, step=1, limit=4
    $region2: #{tpu_custom_call.1} parent=1 // loop_pre_header
      _
    $region3: #{tpu_custom_call.1} parent=1 // loop_header
      %s17 = sphi 0, %s21
      %p18 = scmp.ge.s32.totalorder %s17, 4
      %s24 = sphi 0, %s36
      %s25 = sphi 0, %s32
      %s26 = sphi 0, %s24
      %s27 = sphi 0, %s25
      %s28 = sphi 0, %s26
      %s29 = sphi 0, %s27
      %s45 = sphi 0, %s47
      %s48 = sphi 0, %s45
      %s49 = sphi 0, %s48
      %s65 = sphi 0, %s49
      %s77 = sphi 0, %s79
      %s80 = sphi 0, %s77
      %s81 = sphi 0, %s80
      %s97 = sphi 0, %s81
      %s109 = sphi 0, %s111
      %s112 = sphi 0, %s109
      %s113 = sphi 0, %s112
      %s129 = sphi 0, %s113
      %s135 = sphi 0, %s137
      %s138 = sphi 0, %s135
      %s139 = sphi 0, %s138
      %s155 = sphi 0, %s139
      %s161 = sphi 0, %s163
      %s164 = sphi 0, %s161
      %s165 = sphi 0, %s164
      %s181 = sphi 0, %s165
    $region4: #{tpu_custom_call.1} parent=1 // loop_header_branch
      %20 = sbr.rel (%p18) target = $region8
    $region5: #{tpu_custom_call.1} parent=1 // loop_body
      %s22 = ssub.s32 %s17, 1
      %s23 = ssub.s32 %s17, 2
      %s30 = sadd.s32 1, %s25
      %p31 = scmp.ge.s32.totalorder %s30, 1
      %s32 = scalar_select %p31, 0, %s30
      %s33 = sadd.s32 1, %s24
      %s34 = scalar_select %p31, %s33, %s24
      %p35 = scmp.ge.s32.totalorder %s34, 2
      %s36 = scalar_select %p35, 0, %s34
      %s37 = sadd.s32 %s24, %s25
      %p38 = scmp.lt.s32.totalorder %s37, 0
      %s39 = scalar_select %p38, %s37, 0
      %s40 = sadd.s32 %s36, %s32
      %p41 = scmp.lt.s32.totalorder %s40, 0
      %s42 = scalar_select %p41, %s40, 0
      %s43 = ssub.s32 %s39, %s42
      %p44 = scmp.eq.s32.totalorder %s43, 0
      %s46 = sadd.s32 %s45, 1
      %s47 = scalar_select %p44, %s45, %s46
      %p50 = pneg %p44
      %p51 = scmp.eq.s32.totalorder %s17, 1
      %p52 = por %p50, %p51
      %p53 = scmp.ne.s32.totalorder %s45, %s48
      %p54 = scmp.eq.s32.totalorder %s17, 0
      %p55 = por %p53, %p54
      %p56 = scmp.ne.s32.totalorder %s45, %s48
      %p57 = scmp.eq.s32.totalorder %s22, 1
      %p58 = por %p56, %p57
      %p59 = scmp.ne.s32.totalorder %s48, %s49
      %p60 = scmp.eq.s32.totalorder %s22, 0
      %p61 = por %p59, %p60
      %p62 = scmp.ne.s32.totalorder %s48, %s49
      %p63 = scmp.eq.s32.totalorder %s23, 1
      %p64 = por %p62, %p63
      %p66 = scmp.ne.s32.totalorder %s49, %s65
      %p67 = scmp.eq.s32.totalorder %s23, 0
      %p68 = por %p66, %p67
      %s69 = sadd.s32 %s24, %s25
      %p70 = scmp.lt.s32.totalorder %s69, 0
      %s71 = scalar_select %p70, %s69, 0
      %s72 = sadd.s32 %s36, %s32
      %p73 = scmp.lt.s32.totalorder %s72, 0
      %s74 = scalar_select %p73, %s72, 0
      %s75 = ssub.s32 %s71, %s74
      %p76 = scmp.eq.s32.totalorder %s75, 0
      %s78 = sadd.s32 %s77, 1
      %s79 = scalar_select %p76, %s77, %s78
      %p82 = pneg %p76
      %p83 = scmp.eq.s32.totalorder %s17, 1
      %p84 = por %p82, %p83
      %p85 = scmp.ne.s32.totalorder %s77, %s80
      %p86 = scmp.eq.s32.totalorder %s17, 0
      %p87 = por %p85, %p86
      %p88 = scmp.ne.s32.totalorder %s77, %s80
      %p89 = scmp.eq.s32.totalorder %s22, 1
      %p90 = por %p88, %p89
      %p91 = scmp.ne.s32.totalorder %s80, %s81
      %p92 = scmp.eq.s32.totalorder %s22, 0
      %p93 = por %p91, %p92
      %p94 = scmp.ne.s32.totalorder %s80, %s81
      %p95 = scmp.eq.s32.totalorder %s23, 1
      %p96 = por %p94, %p95
      %p98 = scmp.ne.s32.totalorder %s81, %s97
      %p99 = scmp.eq.s32.totalorder %s23, 0
      %p100 = por %p98, %p99
      %s101 = sadd.s32 %s24, %s25
      %p102 = scmp.lt.s32.totalorder %s101, 0
      %s103 = scalar_select %p102, %s101, 0
      %s104 = sadd.s32 %s36, %s32
      %p105 = scmp.lt.s32.totalorder %s104, 0
      %s106 = scalar_select %p105, %s104, 0
      %s107 = ssub.s32 %s103, %s106
      %p108 = scmp.eq.s32.totalorder %s107, 0
      %s110 = sadd.s32 %s109, 1
      %s111 = scalar_select %p108, %s109, %s110
      %p114 = pneg %p108
      %p115 = scmp.eq.s32.totalorder %s17, 1
      %p116 = por %p114, %p115
      %p117 = scmp.ne.s32.totalorder %s109, %s112
      %p118 = scmp.eq.s32.totalorder %s17, 0
      %p119 = por %p117, %p118
      %p120 = scmp.ne.s32.totalorder %s109, %s112
      %p121 = scmp.eq.s32.totalorder %s22, 1
      %p122 = por %p120, %p121
      %p123 = scmp.ne.s32.totalorder %s112, %s113
      %p124 = scmp.eq.s32.totalorder %s22, 0
      %p125 = por %p123, %p124
      %p126 = scmp.ne.s32.totalorder %s112, %s113
      %p127 = scmp.eq.s32.totalorder %s23, 1
      %p128 = por %p126, %p127
      %p130 = scmp.ne.s32.totalorder %s113, %s129
      %p131 = scmp.eq.s32.totalorder %s23, 0
      %p132 = por %p130, %p131
      %s133 = ssub.s32 %s24, %s36
      %p134 = scmp.eq.s32.totalorder %s133, 0
      %s136 = sadd.s32 %s135, 1
      %s137 = scalar_select %p134, %s135, %s136
      %p140 = pneg %p134
      %p141 = scmp.eq.s32.totalorder %s17, 1
      %p142 = por %p140, %p141
      %p143 = scmp.ne.s32.totalorder %s135, %s138
      %p144 = scmp.eq.s32.totalorder %s17, 0
      %p145 = por %p143, %p144
      %p146 = scmp.ne.s32.totalorder %s135, %s138
      %p147 = scmp.eq.s32.totalorder %s22, 1
      %p148 = por %p146, %p147
      %p149 = scmp.ne.s32.totalorder %s138, %s139
      %p150 = scmp.eq.s32.totalorder %s22, 0
      %p151 = por %p149, %p150
      %p152 = scmp.ne.s32.totalorder %s138, %s139
      %p153 = scmp.eq.s32.totalorder %s23, 1
      %p154 = por %p152, %p153
      %p156 = scmp.ne.s32.totalorder %s139, %s155
      %p157 = scmp.eq.s32.totalorder %s23, 0
      %p158 = por %p156, %p157
      %s159 = ssub.s32 %s24, %s36
      %p160 = scmp.eq.s32.totalorder %s159, 0
      %s162 = sadd.s32 %s161, 1
      %s163 = scalar_select %p160, %s161, %s162
      %p166 = pneg %p160
      %p167 = scmp.eq.s32.totalorder %s17, 1
      %p168 = por %p166, %p167
      %p169 = scmp.ne.s32.totalorder %s161, %s164
      %p170 = scmp.eq.s32.totalorder %s17, 0
      %p171 = por %p169, %p170
      %p172 = scmp.ne.s32.totalorder %s161, %s164
      %p173 = scmp.eq.s32.totalorder %s22, 1
      %p174 = por %p172, %p173
      %p175 = scmp.ne.s32.totalorder %s164, %s165
      %p176 = scmp.eq.s32.totalorder %s22, 0
      %p177 = por %p175, %p176
      %p178 = scmp.ne.s32.totalorder %s164, %s165
      %p179 = scmp.eq.s32.totalorder %s23, 1
      %p180 = por %p178, %p179
      %p182 = scmp.ne.s32.totalorder %s165, %s181
      %p183 = scmp.eq.s32.totalorder %s23, 0
      %p184 = por %p182, %p183
      %p185 = scmp.le.s32.totalorder 1, %s17
      %p186 = scmp.lt.s32.totalorder %s17, 3
      %p187 = pnand %p185, %p186
      %p188 = pneg %p187
      // Predicated region
      $region9: #{tpu_custom_call.1} parent=5 // pred_check
        _
      $region10: #{tpu_custom_call.1} parent=5 // pred_check_branch
        %190 = sbr.rel (%p187) target = $region12
      $region11: #{tpu_custom_call.1} parent=5 // pred_region
        %s191 = ssub.s32 %s17, 1
      $region12: #{tpu_custom_call.1} parent=5 // pred_fallthru
        _
      %p192 = scmp.lt.s32.totalorder %s17, 2
      // Predicated region
      $region13: #{tpu_custom_call.1} parent=5 // pred_check
        %p193 = pneg %p192
      $region14: #{tpu_custom_call.1} parent=5 // pred_check_branch
        %195 = sbr.rel (%p193) target = $region16
      $region15: #{tpu_custom_call.1} parent=5 // pred_region
        // Predicated region
        $region17: #{tpu_custom_call.1} parent=15 // pred_check
          %p196 = pneg %p55
        $region18: #{tpu_custom_call.1} parent=15 // pred_check_branch
          %198 = sbr.rel (%p196) target = $region20
        $region19: #{tpu_custom_call.1} parent=15 // pred_region
          %s199 = sand.u32 %s45, 1
          %s200 = scalar_lea.sflag [#allocation5], %s199
          %s201 = sand.u32 %s45, 1
          %s202 = smul.addr %s201, 64
          %s203 = scalar_lea.vmem [#allocation4], %s202
          %s204 = sadd.s32 %s24, %s25
          %p205 = scmp.lt.s32.totalorder %s204, 0
          %s206 = scalar_select %p205, %s204, 0
          %s207 = smul.u32 2, %s206
          %s209 = ssub.s32 1024, 1024
          %210 = vsyncadd %s200, %s209
          %s211 = smul.addr %s207, 4
          %s212 = smul.addr %s211, 128
          %s213 = scalar_lea.hbm %s0, %s212
          %s214 = sshll.u32 %s203, 4
          %s215 = int_to_ptr.vmem [resolvable:$true] %s214
          %220 = dma.hbm_to_vmem [thread:$0]  %s213, 1024, %s215, %s200, 512, 512, 32
        $region20: #{tpu_custom_call.1} parent=15 // pred_fallthru
          _
        // Predicated region
        $region21: #{tpu_custom_call.1} parent=15 // pred_check
          %p221 = pneg %p87
        $region22: #{tpu_custom_call.1} parent=15 // pred_check_branch
          %223 = sbr.rel (%p221) target = $region24
        $region23: #{tpu_custom_call.1} parent=15 // pred_region
          %s224 = sand.u32 %s77, 1
          %s225 = scalar_lea.sflag [#allocation7], %s224
          %s226 = sand.u32 %s77, 1
          %s227 = smul.addr %s226, 64
          %s228 = scalar_lea.vmem [#allocation6], %s227
          %s229 = sadd.s32 %s24, %s25
          %p230 = scmp.lt.s32.totalorder %s229, 0
          %s231 = scalar_select %p230, %s229, 0
          %s232 = smul.u32 2, %s231
          %s234 = ssub.s32 1024, 1024
          %235 = vsyncadd %s225, %s234
          %s236 = smul.addr %s232, 4
          %s237 = smul.addr %s236, 128
          %s238 = scalar_lea.hbm %s1, %s237
          %s239 = sshll.u32 %s228, 4
          %s240 = int_to_ptr.vmem [resolvable:$true] %s239
          %245 = dma.hbm_to_vmem [thread:$0]  %s238, 1024, %s240, %s225, 512, 512, 32
        $region24: #{tpu_custom_call.1} parent=15 // pred_fallthru
          _
        // Predicated region
        $region25: #{tpu_custom_call.1} parent=15 // pred_check
          %p246 = pneg %p119
        $region26: #{tpu_custom_call.1} parent=15 // pred_check_branch
          %248 = sbr.rel (%p246) target = $region28
        $region27: #{tpu_custom_call.1} parent=15 // pred_region
          %s249 = sadd.s32 %s24, %s25
          %p250 = scmp.lt.s32.totalorder %s249, 0
          %s251 = scalar_select %p250, %s249, 0
          %s252 = smul.u32 2, %s251
          %p253 = scmp.lt.s32.totalorder %s252, 1
          %s254 = scalar_select %p253, %s252, 1
          %s255 = smul.addr %s254, 8
          %s256 = scalar_lea.vmem %s2, %s255
          %s257 = sadd.s32 %s24, %s25
          %p258 = scmp.lt.s32.totalorder %s257, 0
          %s259 = scalar_select %p258, %s257, 0
          %s260 = smul.u32 2, %s259
        $region28: #{tpu_custom_call.1} parent=15 // pred_fallthru
          _
      $region16: #{tpu_custom_call.1} parent=5 // pred_fallthru
        _
      %p261 = scmp.le.s32.totalorder 1, %s17
      %p262 = scmp.lt.s32.totalorder %s17, 3
      %p263 = pnand %p261, %p262
      %p264 = pneg %p263
      // Predicated region
      $region29: #{tpu_custom_call.1} parent=5 // pred_check
        _
      $region30: #{tpu_custom_call.1} parent=5 // pred_check_branch
        %266 = sbr.rel (%p263) target = $region32
      $region31: #{tpu_custom_call.1} parent=5 // pred_region
        %s267 = ssub.s32 %s17, 1
        %s268 = sand.u32 %s48, 1
        %s269 = scalar_lea.sflag [#allocation5], %s268
        %s270 = sand.u32 %s48, 1
        %s271 = smul.addr %s270, 64
        %s272 = scalar_lea.vmem [#allocation4], %s271
        // Predicated region
        $region33: #{tpu_custom_call.1} parent=31 // pred_check
          %p273 = pneg %p61
        $region34: #{tpu_custom_call.1} parent=31 // pred_check_branch
          %275 = sbr.rel (%p273) target = $region36
        $region35: #{tpu_custom_call.1} parent=31 // pred_region
          %276 = dma.done %s269, 1024
        $region36: #{tpu_custom_call.1} parent=31 // pred_fallthru
          _
        %s277 = sand.u32 %s80, 1
        %s278 = scalar_lea.sflag [#allocation7], %s277
        %s279 = sand.u32 %s80, 1
        %s280 = smul.addr %s279, 64
        %s281 = scalar_lea.vmem [#allocation6], %s280
        // Predicated region
        $region37: #{tpu_custom_call.1} parent=31 // pred_check
          %p282 = pneg %p93
        $region38: #{tpu_custom_call.1} parent=31 // pred_check_branch
          %284 = sbr.rel (%p282) target = $region40
        $region39: #{tpu_custom_call.1} parent=31 // pred_region
          %285 = dma.done %s278, 1024
        $region40: #{tpu_custom_call.1} parent=31 // pred_fallthru
          _
        %s286 = sand.u32 %s48, 1
        %s287 = scalar_lea.sflag [#allocation5], %s286
        %s288 = sand.u32 %s48, 1
        %s289 = smul.addr %s288, 64
        %s290 = scalar_lea.vmem [#allocation4], %s289
        %p291 = pneg %p61
        %p292 = pneg %p58
        %s293 = sand.u32 %s80, 1
        %s294 = scalar_lea.sflag [#allocation7], %s293
        %s295 = sand.u32 %s80, 1
        %s296 = smul.addr %s295, 64
        %s297 = scalar_lea.vmem [#allocation6], %s296
        %p298 = pneg %p93
        %p299 = pneg %p90
        %s300 = sadd.s32 %s26, %s27
        %p301 = scmp.lt.s32.totalorder %s300, 0
        %s302 = scalar_select %p301, %s300, 0
        %s303 = smul.u32 2, %s302
        %p304 = scmp.lt.s32.totalorder %s303, 1
        %s305 = scalar_select %p304, %s303, 1
        %s306 = smul.addr %s305, 8
        %s307 = scalar_lea.vmem %s2, %s306
        %p308 = pneg %p125
        %p309 = pneg %p122
        %p310 = pneg %p151
        %p311 = pneg %p148
        %p312 = scmp.lt.s32.totalorder %s26, 1
        %s313 = scalar_select %p312, %s26, 1
        %s314 = scalar_lea.vmem %s3, %s313
        %p315 = pneg %p177
        %p316 = pneg %p174
        %p317 = scmp.lt.s32.totalorder %s26, 1
        %s318 = scalar_select %p317, %s26, 1
        %s319 = scalar_lea.vmem %s4, %s318
        %s320 = sadd.s32 %s26, %s27
        %p321 = scmp.lt.s32.totalorder %s320, 0
        %s322 = scalar_select %p321, %s320, 0
        %s323 = smul.u32 2, %s322
        %s324 = sadd.s32 %s26, %s27
        %p325 = scmp.lt.s32.totalorder %s324, 0
        %s326 = scalar_select %p325, %s324, 0
        %s327 = smul.u32 2, %s326
        %s328 = sadd.s32 %s26, %s27
        %p329 = scmp.lt.s32.totalorder %s328, 0
        %s330 = scalar_select %p329, %s328, 0
        %s331 = smul.u32 2, %s330
        %p332 = scmp.lt.s32.totalorder %s331, 1
        %s333 = scalar_select %p332, %s331, 1
        %s334 = smul.addr %s333, 8
        %s335 = scalar_lea.vmem %s2, %s334
        %s336 = sadd.s32 %s26, %s27
        %p337 = scmp.lt.s32.totalorder %s336, 0
        %s338 = scalar_select %p337, %s336, 0
        %s339 = smul.u32 2, %s338
        %p340 = scmp.lt.s32.totalorder %s26, 1
        %s341 = scalar_select %p340, %s26, 1
        %s342 = scalar_lea.vmem %s3, %s341
        %p343 = scmp.lt.s32.totalorder %s26, 1
        %s344 = scalar_select %p343, %s26, 1
        %s345 = scalar_lea.vmem %s4, %s344
        %p346 = scmp.eq.s32.totalorder %s27, 0
        // Predicated region
        $region41: #{tpu_custom_call.1} parent=31 // pred_check
          %p347 = pneg %p346
        $region42: #{tpu_custom_call.1} parent=31 // pred_check_branch
          %349 = sbr.rel (%p347) target = $region44
        $region43: #{tpu_custom_call.1} parent=31 // pred_region
          %vm350 = vcmask 7168
          %351 = vst.msk [vmem:[#allocation2] sm:$0xff] %vm350, 0.0
          %352 = vst.msk [vmem:[#allocation2 + $0x8] sm:$0xff] %vm350, 0.0
          %353 = vst.msk [vmem:[#allocation3] sm:$0xff] %vm350, 0.0
          %354 = vst.msk [vmem:[#allocation3 + $0x8] sm:$0xff] %vm350, 0.0
        $region44: #{tpu_custom_call.1} parent=31 // pred_fallthru
          _
        %v355 = vld [vmem:[%s272] sm:$0xff]
        %v356 = vld [vmem:[%s272 + $0x8] sm:$0xff]
        %v357 = vld [vmem:[%s272 + $0x10] sm:$0xff]
        %v358 = vld [vmem:[%s272 + $0x18] sm:$0xff]
        %v359 = vld [vmem:[%s272 + $0x20] sm:$0xff]
        %v360 = vld [vmem:[%s272 + $0x28] sm:$0xff]
        %v361 = vld [vmem:[%s272 + $0x30] sm:$0xff]
        %v362 = vld [vmem:[%s272 + $0x38] sm:$0xff]
        %v363 = vld [vmem:[%s281] sm:$0xff]
        %v364 = vld [vmem:[%s281 + $0x8] sm:$0xff]
        %v365 = vld [vmem:[%s281 + $0x10] sm:$0xff]
        %v366 = vld [vmem:[%s281 + $0x18] sm:$0xff]
        %v367 = vld [vmem:[%s281 + $0x20] sm:$0xff]
        %v368 = vld [vmem:[%s281 + $0x28] sm:$0xff]
        %v369 = vld [vmem:[%s281 + $0x30] sm:$0xff]
        %v370 = vld [vmem:[%s281 + $0x38] sm:$0xff]
        %v371 = vmax.f32 %v363, %v365
        %v372 = vmax.f32 %v364, %v366
        %v373 = vmax.f32 %v371, %v372
        %374 = vmax.xlane.f32.xlu0 %v373
        %v375 = vpop.xlane.xlu0 %374
        %v376 = vmax.f32 %v367, %v369
        %v377 = vmax.f32 %v368, %v370
        %v378 = vmax.f32 %v376, %v377
        %379 = vmax.xlane.f32.xlu0 %v378
        %v380 = vpop.xlane.xlu0 %379
        %v381 = vsub.f32 %v363, %v375
        %v382 = vsub.f32 %v364, %v375
        %v383 = vsub.f32 %v365, %v375
        %v384 = vsub.f32 %v366, %v375
        %v385 = vsub.f32 %v367, %v380
        %v386 = vsub.f32 %v368, %v380
        %v387 = vsub.f32 %v369, %v380
        %v388 = vsub.f32 %v370, %v380
        %v389 = vmul.f32 %v381, 1.442695
        %v390 = vpow.pop %v389
        %v391 = vmul.f32 %v382, 1.442695
        %v392 = vpow.pop %v391
        %v393 = vmul.f32 %v383, 1.442695
        %v394 = vpow.pop %v393
        %v395 = vmul.f32 %v384, 1.442695
        %v396 = vpow.pop %v395
        %v397 = vmul.f32 %v385, 1.442695
        %v398 = vpow.pop %v397
        %v399 = vmul.f32 %v386, 1.442695
        %v400 = vpow.pop %v399
        %v401 = vmul.f32 %v387, 1.442695
        %v402 = vpow.pop %v401
        %v403 = vmul.f32 %v388, 1.442695
        %v404 = vpow.pop %v403
        %v405 = vadd.f32 %v390, %v392
        %v406 = vadd.f32 %v405, %v394
        %v407 = vadd.f32 %v406, %v396
        %408 = vadd.xlane.f32.xlu0 %v407
        %v409 = vpop.xlane.xlu0 %408
        %v410 = vadd.f32 %v398, %v400
        %v411 = vadd.f32 %v410, %v402
        %v412 = vadd.f32 %v411, %v404
        %413 = vadd.xlane.f32.xlu0 %v412
        %v414 = vpop.xlane.xlu0 %413
        %v415 = vmax.f32 %v355, %v357
        %v416 = vmax.f32 %v356, %v358
        %v417 = vmax.f32 %v415, %v416
        %418 = vmax.xlane.f32.xlu0 %v417
        %v419 = vpop.xlane.xlu0 %418
        %v420 = vmax.f32 %v359, %v361
        %v421 = vmax.f32 %v360, %v362
        %v422 = vmax.f32 %v420, %v421
        %423 = vmax.xlane.f32.xlu0 %v422
        %v424 = vpop.xlane.xlu0 %423
        %v425 = vsub.f32 %v355, %v419
        %v426 = vsub.f32 %v356, %v419
        %v427 = vsub.f32 %v357, %v419
        %v428 = vsub.f32 %v358, %v419
        %v429 = vsub.f32 %v359, %v424
        %v430 = vsub.f32 %v360, %v424
        %v431 = vsub.f32 %v361, %v424
        %v432 = vsub.f32 %v362, %v424
        %v433 = vmul.f32 %v425, 1.442695
        %v434 = vpow.pop %v433
        %v435 = vmul.f32 %v426, 1.442695
        %v436 = vpow.pop %v435
        %v437 = vmul.f32 %v427, 1.442695
        %v438 = vpow.pop %v437
        %v439 = vmul.f32 %v428, 1.442695
        %v440 = vpow.pop %v439
        %v441 = vmul.f32 %v429, 1.442695
        %v442 = vpow.pop %v441
        %v443 = vmul.f32 %v430, 1.442695
        %v444 = vpow.pop %v443
        %v445 = vmul.f32 %v431, 1.442695
        %v446 = vpow.pop %v445
        %v447 = vmul.f32 %v432, 1.442695
        %v448 = vpow.pop %v447
        %v449 = vadd.f32 %v434, %v436
        %v450 = vadd.f32 %v449, %v438
        %v451 = vadd.f32 %v450, %v440
        %452 = vadd.xlane.f32.xlu0 %v451
        %v453 = vpop.xlane.xlu0 %452
        %v454 = vadd.f32 %v442, %v444
        %v455 = vadd.f32 %v454, %v446
        %v456 = vadd.f32 %v455, %v448
        %457 = vadd.xlane.f32.xlu0 %v456
        %v458 = vpop.xlane.xlu0 %457
        %v459 = vlog2.pop %v453
        %v460 = vmul.f32 %v459, 0.6931472
        %v461 = vlog2.pop %v458
        %v462 = vmul.f32 %v461, 0.6931472
        %v463 = vsub.f32 %v425, %v460
        %v464 = vsub.f32 %v426, %v460
        %v465 = vsub.f32 %v427, %v460
        %v466 = vsub.f32 %v428, %v460
        %v467 = vsub.f32 %v429, %v462
        %v468 = vsub.f32 %v430, %v462
        %v469 = vsub.f32 %v431, %v462
        %v470 = vsub.f32 %v432, %v462
        %v471 = vand.u32 2147483647, %v355
        %v472 = vand.u32 2147483647, %v356
        %v473 = vand.u32 2147483647, %v357
        %v474 = vand.u32 2147483647, %v358
        %v475 = vand.u32 2147483647, %v359
        %v476 = vand.u32 2147483647, %v360
        %v477 = vand.u32 2147483647, %v361
        %v478 = vand.u32 2147483647, %v362
        %vm479 = vcmp.eq.f32.partialorder %v471, inf
        %vm480 = vcmp.eq.f32.partialorder %v472, inf
        %vm481 = vcmp.eq.f32.partialorder %v473, inf
        %vm482 = vcmp.eq.f32.partialorder %v474, inf
        %vm483 = vcmp.eq.f32.partialorder %v475, inf
        %vm484 = vcmp.eq.f32.partialorder %v476, inf
        %vm485 = vcmp.eq.f32.partialorder %v477, inf
        %vm486 = vcmp.eq.f32.partialorder %v478, inf
        %v487 = vmul.f32 %v390, %v463
        %v488 = vmul.f32 %v392, %v464
        %v489 = vmul.f32 %v394, %v465
        %v490 = vmul.f32 %v396, %v466
        %v491 = vmul.f32 %v398, %v467
        %v492 = vmul.f32 %v400, %v468
        %v493 = vmul.f32 %v402, %v469
        %v494 = vmul.f32 %v404, %v470
        %v495 = vsel %vm479, 0.0, %v487
        %v496 = vsel %vm480, 0.0, %v488
        %v497 = vsel %vm481, 0.0, %v489
        %v498 = vsel %vm482, 0.0, %v490
        %v499 = vsel %vm483, 0.0, %v491
        %v500 = vsel %vm484, 0.0, %v492
        %v501 = vsel %vm485, 0.0, %v493
        %v502 = vsel %vm486, 0.0, %v494
        %v503 = vadd.f32 %v495, %v496
        %v504 = vadd.f32 %v503, %v497
        %v505 = vadd.f32 %v504, %v498
        %506 = vadd.xlane.f32.xlu0 %v505
        %v507 = vpop.xlane.xlu0 %506
        %v508 = vadd.f32 %v499, %v500
        %v509 = vadd.f32 %v508, %v501
        %v510 = vadd.f32 %v509, %v502
        %511 = vadd.xlane.f32.xlu0 %v510
        %v512 = vpop.xlane.xlu0 %511
        %v513 = vrcp.pop %v409
        %v514 = vmul.f32 %v507, %v513
        %v515 = vrcp.pop %v414
        %v516 = vmul.f32 %v512, %v515
        %s517 = sadd.s32 %s26, %s27
        %s518 = smul.u32 %s517, 16
        %v519 = vlaneseq
        %v520 = vshrl.u32 %v519, 7
        %v521 = vadd.s32 %v520, 8
        %v522 = vstv %s518
        %v523 = vadd.s32 %v522, %v520
        %v524 = vadd.s32 %v522, %v521
        %vm525 = vcmp.lt.s32.totalorder %v523, 16
        %vm526 = vcmp.lt.s32.totalorder %v524, 16
        %v527 = vld [vmem:[%s335] sm:$0xff]
        %v528 = vld [vmem:[%s335 + $0x8] sm:$0xff]
        %vm529 = vcmp.ne.s32.totalorder %v527, 4294967196
        %vm530 = vcmp.ne.s32.totalorder %v528, 4294967196
        %vm531 = vmand %vm525, %vm529
        %vm532 = vmand %vm526, %vm530
        %v533 = vld [vmem:[#allocation2] sm:$0xff]
        %v534 = vld [vmem:[#allocation2 + $0x8] sm:$0xff]
        %v535 = vsel %vm531, %v514, 0.0
        %v536 = vsel %vm532, %v516, 0.0
        %v537 = vadd.f32 %v533, %v535
        %v538 = vadd.f32 %v534, %v536
        %vm539 = vcmask 7168
        %540 = vst.msk [vmem:[#allocation2] sm:$0xff] %vm539, %v537
        %541 = vst.msk [vmem:[#allocation2 + $0x8] sm:$0xff] %vm539, %v538
        %v542 = vld [vmem:[#allocation3] sm:$0xff]
        %v543 = vld [vmem:[#allocation3 + $0x8] sm:$0xff]
        %v544 = vsel %vm531, 1, 0
        %v545 = vsel %vm532, 1, 0
        %v546 = vcvt.s32.f32 %v544
        %v547 = vcvt.s32.f32 %v545
        %v548 = vadd.f32 %v542, %v546
        %v549 = vadd.f32 %v543, %v547
        %550 = vst.msk [vmem:[#allocation3] sm:$0xff] %vm539, %v548
        %551 = vst.msk [vmem:[#allocation3 + $0x8] sm:$0xff] %vm539, %v549
        // Predicated region
        $region45: #{tpu_custom_call.1} parent=31 // pred_check
          %p552 = pneg %p346
        $region46: #{tpu_custom_call.1} parent=31 // pred_check_branch
          %554 = sbr.rel (%p552) target = $region48
        $region47: #{tpu_custom_call.1} parent=31 // pred_region
          %v555 = vld [vmem:[#allocation2] sm:$0xff]
          %v556 = vld [vmem:[#allocation2 + $0x8] sm:$0xff]
          %v557 = vsel %vm539, %v555, 0.0
          %v558 = vsel %vm539, %v556, 0.0
          %v559 = vadd.f32 %v557, %v558
          %560 = vadd.xlane.f32.xlu0 %v559
          %v561 = vpop.xlane.xlu0 %560
          %v562 = vrot.slane %v561, 4
          %v563 = vadd.f32 %v561, %v562
          %v564 = vrot.slane %v563, 2
          %v565 = vadd.f32 %v563, %v564
          %v566 = vrot.slane %v565, 1
          %v567 = vadd.f32 %v565, %v566
          %s568 = vtos %v567
          %v569 = vstv %s568
          %vm570 = vcmask 0
          %571 = vst.msk [vmem:[%s342] sm:$0x1] %vm570, %v569
          %v572 = vld [vmem:[#allocation3] sm:$0xff]
          %v573 = vld [vmem:[#allocation3 + $0x8] sm:$0xff]
          %v574 = vsel %vm539, %v572, 0.0
          %v575 = vsel %vm539, %v573, 0.0
          %v576 = vadd.f32 %v574, %v575
          %577 = vadd.xlane.f32.xlu0 %v576
          %v578 = vpop.xlane.xlu0 %577
          %v579 = vrot.slane %v578, 4
          %v580 = vadd.f32 %v578, %v579
          %v581 = vrot.slane %v580, 2
          %v582 = vadd.f32 %v580, %v581
          %v583 = vrot.slane %v582, 1
          %v584 = vadd.f32 %v582, %v583
          %s585 = vtos %v584
          %v586 = vstv %s585
          %587 = vst.msk [vmem:[%s345] sm:$0x1] %vm570, %v586
        $region48: #{tpu_custom_call.1} parent=31 // pred_fallthru
          _
        %p588 = scmp.lt.s32.totalorder %s26, 1
        %s589 = scalar_select %p588, %s26, 1
        %s590 = scalar_lea.vmem %s3, %s589
        %p591 = scmp.lt.s32.totalorder %s26, 1
        %s592 = scalar_select %p591, %s26, 1
        %s593 = scalar_lea.vmem %s4, %s592
        // Predicated region
        $region49: #{tpu_custom_call.1} parent=31 // pred_check
          %p594 = pneg %p148
        $region50: #{tpu_custom_call.1} parent=31 // pred_check_branch
          %596 = sbr.rel (%p594) target = $region52
        $region51: #{tpu_custom_call.1} parent=31 // pred_region
          _
        $region52: #{tpu_custom_call.1} parent=31 // pred_fallthru
          _
        // Predicated region
        $region53: #{tpu_custom_call.1} parent=31 // pred_check
          %p597 = pneg %p174
        $region54: #{tpu_custom_call.1} parent=31 // pred_check_branch
          %599 = sbr.rel (%p597) target = $region56
        $region55: #{tpu_custom_call.1} parent=31 // pred_region
          _
        $region56: #{tpu_custom_call.1} parent=31 // pred_fallthru
          _
      $region32: #{tpu_custom_call.1} parent=5 // pred_fallthru
        _
      %p600 = scmp.le.s32.totalorder 2, %s17
      // Predicated region
      $region57: #{tpu_custom_call.1} parent=5 // pred_check
        %p601 = pneg %p600
      $region58: #{tpu_custom_call.1} parent=5 // pred_check_branch
        %603 = sbr.rel (%p601) target = $region60
      $region59: #{tpu_custom_call.1} parent=5 // pred_region
        %s604 = ssub.s32 %s17, 2
        // Predicated region
        $region61: #{tpu_custom_call.1} parent=59 // pred_check
          %p605 = pneg %p154
        $region62: #{tpu_custom_call.1} parent=59 // pred_check_branch
          %607 = sbr.rel (%p605) target = $region64
        $region63: #{tpu_custom_call.1} parent=59 // pred_region
          %p608 = scmp.lt.s32.totalorder %s28, 1
          %s609 = scalar_select %p608, %s28, 1
          %s610 = scalar_lea.vmem %s3, %s609
        $region64: #{tpu_custom_call.1} parent=59 // pred_fallthru
          _
        // Predicated region
        $region65: #{tpu_custom_call.1} parent=59 // pred_check
          %p611 = pneg %p180
        $region66: #{tpu_custom_call.1} parent=59 // pred_check_branch
          %613 = sbr.rel (%p611) target = $region68
        $region67: #{tpu_custom_call.1} parent=59 // pred_region
          %p614 = scmp.lt.s32.totalorder %s28, 1
          %s615 = scalar_select %p614, %s28, 1
          %s616 = scalar_lea.vmem %s4, %s615
        $region68: #{tpu_custom_call.1} parent=59 // pred_fallthru
          _
      $region60: #{tpu_custom_call.1} parent=5 // pred_fallthru
        _
    $region6: #{tpu_custom_call.1} parent=1 // loop_footer
      %s21 = sadd.s32 1, %s17
    $region7: #{tpu_custom_call.1} parent=1 // loop_footer_branch
      %16 = sbr.rel target = $region3
    $region8: #{tpu_custom_call.1} parent=1 // loop_exit
      _
    %617 = vsyncpa [#allocation5], 1
    %s618 = scalar_lea.sflag [#allocation5], 1
    %619 = vsyncpa %s618, 1
    %620 = vsyncpa [#allocation7], 1
    %s621 = scalar_lea.sflag [#allocation7], 1
    %622 = vsyncpa %s621, 1

</llo_original>
